<compile_context>
chip_gen: v6e
topology: v6e:2x2x1
jax: 0.10.0
libtpu: 0.0.40
codegen_flags: <defaults>
</compile_context>

<pallas_src>
import jax
import jax.numpy as jnp
from jax.experimental import pallas as pl
from jax.experimental.pallas import tpu as pltpu


SUBLANE_BF16 = 16     # bf16 packs 16 rows per vreg -> batch-tile granularity
MAX_TB = 2048         # max batch rows per grid step (tens of KB per buffer -> VMEM-safe on v5e)
SPLIT_THRESHOLD = 512 # above this, force >= 2 grid steps (v7x dual-TensorCore sharding)


def _round_up(n, m):
    return ((n + m - 1) // m) * m


def actor_critic_kernel(x_ref, w1_ref, b1_ref, wh_ref, bh_ref, out_ref):
    # hidden = relu(x @ W1 + b1)       (TB, K)bf16 @ (K, H)bf16 -> (TB, H)f32
    h = jnp.dot(x_ref[...], w1_ref[...], preferred_element_type=jnp.float32)
    h = jnp.maximum(h + b1_ref[...], 0.0)
    # fused heads: [logits | value] = h @ [Wa|Wc] + [ba|bc]   (TB, A+1)f32
    out = jnp.dot(h.astype(wh_ref.dtype), wh_ref[...],
                  preferred_element_type=jnp.float32)
    out_ref[...] = (out + bh_ref[...]).astype(out_ref.dtype)


def prepare_params(params):
    """One-time parameter prep (call once, reuse across forward calls).

    Fuses the actor/critic heads into a single weight/bias and casts the matmul
    weights to bfloat16 (biases stay float32 for the f32 accumulation path).
    """
    w1, b1, wa, ba, wc, bc = params
    wh = jnp.concatenate([wa, wc], axis=1)                                # (H, A+1)
    bh = jnp.concatenate([ba.reshape(1, -1), bc.reshape(1, -1)], axis=1)  # (1, A+1)
    return (
        w1.astype(jnp.bfloat16),               # (K, H)
        b1.reshape(1, -1).astype(jnp.float32),  # (1, H)
        wh.astype(jnp.bfloat16),               # (H, A+1)
        bh.astype(jnp.float32),                # (1, A+1)
    )


def actor_critic_forward(x, prepared):
    """x: [B, state_dim] float32.  prepared: output of prepare_params().

    Returns (policy_logits [B, action_dim] f32, value [B, 1] f32).
    """
    w1_p, b1_p, wh_p, bh_p = prepared
    B, state_dim = x.shape
    hidden = w1_p.shape[1]
    n_out = wh_p.shape[1]          # action_dim + 1 (fused head width)
    action_dim = n_out - 1

    # ---- adaptive batch tiling (only per-call layout work is the tiny row pad + cast) ----
    b_rounded = _round_up(B, SUBLANE_BF16)
    if b_rounded <= SPLIT_THRESHOLD:
        tb = b_rounded                                   # single grid step, minimal padding
    else:
        # >= 2 steps so the "parallel" batch axis shards across v7x's two TensorCores.
        tb = min(MAX_TB, _round_up(-(-b_rounded // 2), SUBLANE_BF16))
    bp = _round_up(B, tb)

    x_p = x if bp == B else jnp.pad(x, ((0, bp - B), (0, 0)))
    x_p = x_p.astype(jnp.bfloat16)

    grid = (bp // tb,)
    flops = 2 * bp * (state_dim * hidden + hidden * n_out)
    bytes_accessed = (
        bp * state_dim * 2                      # x read (bf16)
        + state_dim * hidden * 2 + hidden * 4   # W1 (bf16) + b1 (f32), DMA'd once
        + hidden * n_out * 2 + n_out * 4        # fused head W (bf16) + b (f32), once
        + bp * n_out * 4                        # output write (f32)
    )

    out = pl.pallas_call(
        actor_critic_kernel,
        out_shape=jax.ShapeDtypeStruct((bp, n_out), jnp.float32),
        grid=grid,
        in_specs=[
            pl.BlockSpec((tb, state_dim), lambda i: (i, 0)),   # x: tiled over batch
            pl.BlockSpec((state_dim, hidden), lambda i: (0, 0)),  # W1: VMEM-resident
            pl.BlockSpec((1, hidden), lambda i: (0, 0)),          # b1
            pl.BlockSpec((hidden, n_out), lambda i: (0, 0)),      # fused actor|critic W
            pl.BlockSpec((1, n_out), lambda i: (0, 0)),           # fused actor|critic b
        ],
        out_specs=pl.BlockSpec((tb, n_out), lambda i: (i, 0)),
        compiler_params=pltpu.CompilerParams(
            dimension_semantics=("parallel",)),                   # batch shards across TCs
        cost_estimate=pl.CostEstimate(
            flops=flops, transcendentals=0, bytes_accessed=bytes_accessed),
    )(x_p, w1_p, b1_p, wh_p, bh_p)

    logits = out[:B, :action_dim]
    value = out[:B, action_dim:action_dim + 1]
    return logits, value


def init_params(key, state_dim, action_dim, hidden=64):
    """Deterministic synthetic init (PyTorch-Linear-like uniform bounds), float32."""
    ks = jax.random.split(key, 6)

    def linear(kw, kb, fan_in, fan_out):
        bound = 1.0 / jnp.sqrt(fan_in)
        w = jax.random.uniform(kw, (fan_in, fan_out), jnp.float32, -bound, bound)
        b = jax.random.uniform(kb, (1, fan_out), jnp.float32, -bound, bound)
        return w, b

    w1, b1 = linear(ks[0], ks[1], state_dim, hidden)
    wa, ba = linear(ks[2], ks[3], hidden, action_dim)
    wc, bc = linear(ks[4], ks[5], hidden, 1)
    return (w1, b1, wa, ba, wc, bc)


if __name__ == "__main__":
    key = jax.random.PRNGKey(0)
    k_x, k_p = jax.random.split(key)

    batch, state_dim, action_dim = 8, 32, 6
    x = jax.random.normal(k_x, (batch, state_dim), jnp.float32)
    params = init_params(k_p, state_dim, action_dim)

    # One-time weight prep (fusion + bf16 cast), reused across forward calls.
    prepared = jax.block_until_ready(prepare_params(params))

    fwd = jax.jit(actor_critic_forward)
    logits, value = fwd(x, prepared)
    jax.block_until_ready((logits, value))

    # Reference check in plain JAX f32 (same math as the PyTorch forward).
    # bf16 inputs / f32 accumulation -> loosened tolerance per review (~1e-2 scale).
    w1, b1, wa, ba, wc, bc = params
    h_ref = jnp.maximum(x @ w1 + b1, 0.0)
    logits_ref = h_ref @ wa + ba
    value_ref = h_ref @ wc + bc
    assert logits.shape == (batch, action_dim) and value.shape == (batch, 1)
    assert jnp.allclose(logits, logits_ref, atol=5e-2, rtol=5e-2)
    assert jnp.allclose(value, value_ref, atol=5e-2, rtol=5e-2)

    print("KERNEL_OK")
</pallas_src>

<mosaic_0001>
module attributes {stable_mosaic.version = 11 : i64} {
  func.func @actor_critic_kernel(%arg0: i32, %arg1: memref<16x32xbf16, #tpu.memory_space<vmem>>, %arg2: memref<32x64xbf16, #tpu.memory_space<vmem>>, %arg3: memref<1x64xf32, #tpu.memory_space<vmem>>, %arg4: memref<64x7xbf16, #tpu.memory_space<vmem>>, %arg5: memref<1x7xf32, #tpu.memory_space<vmem>>, %arg6: memref<16x7xf32, #tpu.memory_space<vmem>>) attributes {dimension_semantics = [#tpu.dimension_semantics<parallel>], iteration_bounds = array<i64: 1>, scalar_prefetch = 0 : i64, scratch_operands = 0 : i64, tpu.core_type = #tpu.core_type<tc>, window_params = [{transform_indices = @transform_0, window_bounds = array<i64: 16, 32>}, {pipeline_mode = #tpu.pipeline_mode<synchronous>, transform_indices = @transform_1, window_bounds = array<i64: 32, 64>}, {pipeline_mode = #tpu.pipeline_mode<synchronous>, transform_indices = @transform_2, window_bounds = array<i64: 1, 64>}, {pipeline_mode = #tpu.pipeline_mode<synchronous>, transform_indices = @transform_3, window_bounds = array<i64: 64, 7>}, {pipeline_mode = #tpu.pipeline_mode<synchronous>, transform_indices = @transform_4, window_bounds = array<i64: 1, 7>}, {transform_indices = @transform_5, window_bounds = array<i64: 16, 7>}]} {
    %c0 = arith.constant 0 : index
    %c0_0 = arith.constant 0 : index
    %0 = vector.load %arg1[%c0, %c0_0] : memref<16x32xbf16, #tpu.memory_space<vmem>>, vector<16x32xbf16>
    %c0_1 = arith.constant 0 : index
    %c0_2 = arith.constant 0 : index
    %1 = vector.load %arg2[%c0_1, %c0_2] : memref<32x64xbf16, #tpu.memory_space<vmem>>, vector<32x64xbf16>
    %cst = arith.constant dense<0.000000e+00> : vector<16x64xf32>
    %2 = tpu.matmul %0, %1, %cst {dimension_numbers = #tpu.dot_dimension_numbers<[1], [0], [0], [1], [0, 0, 1, 1], [], []>} : vector<16x32xbf16>, vector<32x64xbf16>, vector<16x64xf32> -> vector<16x64xf32>
    %c0_3 = arith.constant 0 : index
    %c0_4 = arith.constant 0 : index
    %3 = vector.load %arg3[%c0_3, %c0_4] : memref<1x64xf32, #tpu.memory_space<vmem>>, vector<1x64xf32>
    %4 = vector.broadcast %3 : vector<1x64xf32> to vector<16x64xf32>
    %5 = arith.addf %2, %4 : vector<16x64xf32>
    %cst_5 = arith.constant 0.000000e+00 : f32
    %6 = vector.broadcast %cst_5 : f32 to vector<16x64xf32>
    %7 = arith.maximumf %5, %6 : vector<16x64xf32>
    %8 = arith.truncf %7 : vector<16x64xf32> to vector<16x64xbf16>
    %c0_6 = arith.constant 0 : index
    %c0_7 = arith.constant 0 : index
    %9 = vector.load %arg4[%c0_6, %c0_7] : memref<64x7xbf16, #tpu.memory_space<vmem>>, vector<64x7xbf16>
    %cst_8 = arith.constant dense<0.000000e+00> : vector<16x7xf32>
    %10 = tpu.matmul %8, %9, %cst_8 {dimension_numbers = #tpu.dot_dimension_numbers<[1], [0], [0], [1], [0, 0, 1, 1], [], []>} : vector<16x64xbf16>, vector<64x7xbf16>, vector<16x7xf32> -> vector<16x7xf32>
    %c0_9 = arith.constant 0 : index
    %c0_10 = arith.constant 0 : index
    %11 = vector.load %arg5[%c0_9, %c0_10] : memref<1x7xf32, #tpu.memory_space<vmem>>, vector<1x7xf32>
    %12 = vector.broadcast %11 : vector<1x7xf32> to vector<16x7xf32>
    %13 = arith.addf %10, %12 : vector<16x7xf32>
    %c0_11 = arith.constant 0 : index
    %c0_12 = arith.constant 0 : index
    %14 = vector.load %arg6[%c0_11, %c0_12] : memref<16x7xf32, #tpu.memory_space<vmem>>, vector<16x7xf32>
    tpu.vector_store %arg6[%c0_11, %c0_12], %13 {strides = array<i32>} : memref<16x7xf32, #tpu.memory_space<vmem>>, vector<16x7xf32>,
    return
  }
  func.func @transform_0(%arg0: i32) -> (i32, i32) {
    %c0_i32 = arith.constant 0 : i32
    %c0_i32_0 = arith.constant 0 : i32
    return %arg0, %c0_i32 : i32, i32
  }
  func.func @transform_1(%arg0: i32) -> (i32, i32) {
    %c0_i32 = arith.constant 0 : i32
    %c0_i32_0 = arith.constant 0 : i32
    %c0_i32_1 = arith.constant 0 : i32
    return %c0_i32, %c0_i32_0 : i32, i32
  }
  func.func @transform_2(%arg0: i32) -> (i32, i32) {
    %c0_i32 = arith.constant 0 : i32
    %c0_i32_0 = arith.constant 0 : i32
    %c0_i32_1 = arith.constant 0 : i32
    return %c0_i32, %c0_i32_0 : i32, i32
  }
  func.func @transform_3(%arg0: i32) -> (i32, i32) {
    %c0_i32 = arith.constant 0 : i32
    %c0_i32_0 = arith.constant 0 : i32
    %c0_i32_1 = arith.constant 0 : i32
    return %c0_i32, %c0_i32_0 : i32, i32
  }
  func.func @transform_4(%arg0: i32) -> (i32, i32) {
    %c0_i32 = arith.constant 0 : i32
    %c0_i32_0 = arith.constant 0 : i32
    %c0_i32_1 = arith.constant 0 : i32
    return %c0_i32, %c0_i32_0 : i32, i32
  }
  func.func @transform_5(%arg0: i32) -> (i32, i32) {
    %c0_i32 = arith.constant 0 : i32
    %c0_i32_0 = arith.constant 0 : i32
    return %arg0, %c0_i32 : i32, i32
  }
}

</mosaic_0001>

<llo_original>
// kernel: actor_critic_forward.1
$region0: #{actor_critic_forward.1}
  #allocation0 [shape = 'u32[]', space=smem, size = 0x4, offset = 0x4, fixed_abs, tag = 'smem constant byte address 0x4 - core index']
  #allocation1 [shape = 'u32[144,128]{1,0:T(1,128)}', space=vmem, size = 0x12000, scoped, tag = 'internal scratch']
  %s0 = inlined_call_operand.vmem [shape: bf16[16,32], index: 0, kind: input, shape index: {}]
  %s1 = inlined_call_operand.vmem [shape: bf16[32,64], index: 1, kind: input, shape index: {}]
  %s2 = inlined_call_operand.vmem [shape: f32[1,64], index: 2, kind: input, shape index: {}]
  %s3 = inlined_call_operand.vmem [shape: bf16[64,7], index: 3, kind: input, shape index: {}]
  %s4 = inlined_call_operand.vmem [shape: f32[1,7], index: 4, kind: input, shape index: {}]
  %s5 = inlined_call_operand.vmem [shape: f32[16,7], index: 5, kind: output, shape index: {}]
  %s6 = sld [smem:[#allocation0]]
  $region30: #{actor_critic_forward.1} parent=0
    _
  %s8 = ssub.s32 1, %s6
  %s9 = scalar_select 0, %s8, %s6
  // Predicated region
  $region2: #{actor_critic_forward.1} parent=0 // pred_check
    _
  $region3: #{actor_critic_forward.1} parent=0 // pred_check_branch
    %11 = sbr.rel (0) target = $region5
  $region4: #{actor_critic_forward.1} parent=0 // pred_region
    _
  $region5: #{actor_critic_forward.1} parent=0 // pred_fallthru
    _
  // Predicated region
  $region6: #{actor_critic_forward.1} parent=0 // pred_check
    _
  $region7: #{actor_critic_forward.1} parent=0 // pred_check_branch
    %13 = sbr.rel (0) target = $region9
  $region8: #{actor_critic_forward.1} parent=0 // pred_region
    _
  $region9: #{actor_critic_forward.1} parent=0 // pred_fallthru
    _
  // Predicated region
  $region10: #{actor_critic_forward.1} parent=0 // pred_check
    _
  $region11: #{actor_critic_forward.1} parent=0 // pred_check_branch
    %15 = sbr.rel (0) target = $region13
  $region12: #{actor_critic_forward.1} parent=0 // pred_region
    _
  $region13: #{actor_critic_forward.1} parent=0 // pred_fallthru
    _
  // Predicated region
  $region14: #{actor_critic_forward.1} parent=0 // pred_check
    _
  $region15: #{actor_critic_forward.1} parent=0 // pred_check_branch
    %17 = sbr.rel (0) target = $region17
  $region16: #{actor_critic_forward.1} parent=0 // pred_region
    _
  $region17: #{actor_critic_forward.1} parent=0 // pred_fallthru
    _
  // Predicated region
  $region18: #{actor_critic_forward.1} parent=0 // pred_check
    _
  $region19: #{actor_critic_forward.1} parent=0 // pred_check_branch
    %19 = sbr.rel (0) target = $region21
  $region20: #{actor_critic_forward.1} parent=0 // pred_region
    _
  $region21: #{actor_critic_forward.1} parent=0 // pred_fallthru
    _
  %v21 = vld [vmem:[%s0] sm:$0xf]
  %v22 = vld [vmem:[%s0 + $0x4] sm:$0xf]
  %v23 = vld [vmem:[%s1] sm:$0xf]
  %v24 = vld [vmem:[%s1 + $0x4] sm:$0xf]
  %v25 = vld [vmem:[%s1 + $0x8] sm:$0xf]
  %v26 = vld [vmem:[%s1 + $0xc] sm:$0xf]
  %v27 = vld [vmem:[%s2] sm:$0x1]
  %v29 = vlaneseq
  %v30 = vshrl.u32 %v29, 7
  %v31 = vsub.s32 0, %v30
  %v32 = vrot.slane %v27, %v31
  %v36 = vunpack.c.l.b16 %v21
  %v37 = vunpack.c.l.b16 %v22
  %v38 = vpack.c.b16 %v37, %v36
  %v43 = vunpack.c.l.b16 %v23
  %v44 = vunpack.c.l.b16 %v24
  %v45 = vunpack.c.l.b16 %v25
  %v46 = vunpack.c.l.b16 %v26
  %v47 = vpack.c.b16 %v44, %v43
  %v48 = vpack.c.b16 %v46, %v45
  %vm51 = vcmask 261120
  %v53 = vsel %vm51, %v38, 0
  %55 = vmatprep.subr.bf16.mxu0 0
  %56 = vmatpush1.bf16.msra.mxu0 0
  %57 = vmatprep.subr.bf16.mxu0 0
  %58 = vmatpush1.bf16.msra.mxu0 0
  %59 = vmatprep.subr.bf16.mxu0 0
  %60 = vmatpush1.bf16.msra.mxu0 0
  %61 = vmatprep.subr.bf16.mxu0 0
  %62 = vmatpush1.bf16.msra.mxu0 0
  %63 = vmatprep.subr.bf16.mxu0 0
  %64 = vmatpush1.bf16.msra.mxu0 0
  %65 = vmatprep.subr.bf16.mxu0 0
  %66 = vmatpush1.bf16.msra.mxu0 0
  %67 = vmatprep.subr.bf16.mxu0 0
  %68 = vmatpush1.bf16.msra.mxu0 %v48
  %69 = vmatprep.subr.bf16.mxu0 0
  %70 = vmatpush1.bf16.msra.mxu0 %v47
  %71 = vmatprep.subr.bf16.mxu0 0
  %72 = vmatpush2.bf16.msra.mxu0 0
  %73 = vmatprep.subr.bf16.mxu0 0
  %74 = vmatpush2.bf16.msra.mxu0 0
  %75 = vmatprep.subr.bf16.mxu0 0
  %76 = vmatpush2.bf16.msra.mxu0 0
  %77 = vmatprep.subr.bf16.mxu0 0
  %78 = vmatpush2.bf16.msra.mxu0 0
  %79 = vmatprep.subr.bf16.mxu0 0
  %80 = vmatpush2.bf16.msra.mxu0 0
  %81 = vmatprep.subr.bf16.mxu0 0
  %82 = vmatpush2.bf16.msra.mxu0 0
  %83 = vmatprep.subr.bf16.mxu0 0
  %84 = vmatpush2.bf16.msra.mxu0 0
  %85 = vmatprep.subr.bf16.mxu0 0
  %86 = vmatpush2.bf16.msra.mxu0 0
  %87 = vmatprep.mubr.bf16.mxu0 0
  %88 = vmatmul.mubr.bf16.gmra.mxu0 %v53
  %v89 = vpop.f32.mrf.mxu0
  %v90 = vadd.f32 %v32, %v89
  %v91 = vpop.f32.mrf.mxu0
  %v92 = vpop.f32.mrf.mxu0
  %v93 = vadd.f32 %v32, %v92
  %v94 = vpop.f32.mrf.mxu0
  %95 = vdwg.mxu0
  %v96 = vmax.f32 %v90, 0.0
  %v97 = vmax.f32 %v93, 0.0
  %v98 = vpack.c.bf16 %v97, %v96
  %v99 = vld [vmem:[%s3] sm:$0xf]
  %v100 = vld [vmem:[%s3 + $0x4] sm:$0xf]
  %v101 = vld [vmem:[%s3 + $0x8] sm:$0xf]
  %v102 = vld [vmem:[%s3 + $0xc] sm:$0xf]
  %v103 = vld [vmem:[%s3 + $0x10] sm:$0xf]
  %v104 = vld [vmem:[%s3 + $0x14] sm:$0xf]
  %v105 = vld [vmem:[%s3 + $0x18] sm:$0xf]
  %v106 = vld [vmem:[%s3 + $0x1c] sm:$0xf]
  %v107 = vld [vmem:[%s4] sm:$0x1]
  %v109 = vlaneseq
  %v110 = vshrl.u32 %v109, 7
  %v111 = vsub.s32 0, %v110
  %v112 = vrot.slane %v107, %v111
  %v122 = vunpack.c.l.b16 %v99
  %v123 = vunpack.c.l.b16 %v100
  %v124 = vunpack.c.l.b16 %v101
  %v125 = vunpack.c.l.b16 %v102
  %v126 = vunpack.c.l.b16 %v103
  %v127 = vunpack.c.l.b16 %v104
  %v128 = vunpack.c.l.b16 %v105
  %v129 = vunpack.c.l.b16 %v106
  %v130 = vpack.c.b16 %v123, %v122
  %v131 = vpack.c.b16 %v125, %v124
  %v132 = vpack.c.b16 %v127, %v126
  %v133 = vpack.c.b16 %v129, %v128
  %vm138 = vcmask 523264
  %v140 = vsel %vm138, %v98, 0
  %142 = vmatprep.subr.bf16.mxu0 0
  %143 = vmatpush1.bf16.msra.mxu0 0
  %144 = vmatprep.subr.bf16.mxu0 0
  %145 = vmatpush1.bf16.msra.mxu0 0
  %146 = vmatprep.subr.bf16.mxu0 0
  %147 = vmatpush1.bf16.msra.mxu0 0
  %148 = vmatprep.subr.bf16.mxu0 0
  %149 = vmatpush1.bf16.msra.mxu0 0
  %150 = vmatprep.subr.bf16.mxu0 0
  %151 = vmatpush1.bf16.msra.mxu0 %v133
  %152 = vmatprep.subr.bf16.mxu0 0
  %153 = vmatpush1.bf16.msra.mxu0 %v132
  %154 = vmatprep.subr.bf16.mxu0 0
  %155 = vmatpush1.bf16.msra.mxu0 %v131
  %156 = vmatprep.subr.bf16.mxu0 0
  %157 = vmatpush1.bf16.msra.mxu0 %v130
  %158 = vmatprep.subr.bf16.mxu0 0
  %159 = vmatpush2.bf16.msra.mxu0 0
  %160 = vmatprep.subr.bf16.mxu0 0
  %161 = vmatpush2.bf16.msra.mxu0 0
  %162 = vmatprep.subr.bf16.mxu0 0
  %163 = vmatpush2.bf16.msra.mxu0 0
  %164 = vmatprep.subr.bf16.mxu0 0
  %165 = vmatpush2.bf16.msra.mxu0 0
  %166 = vmatprep.subr.bf16.mxu0 0
  %167 = vmatpush2.bf16.msra.mxu0 0
  %168 = vmatprep.subr.bf16.mxu0 0
  %169 = vmatpush2.bf16.msra.mxu0 0
  %170 = vmatprep.subr.bf16.mxu0 0
  %171 = vmatpush2.bf16.msra.mxu0 0
  %172 = vmatprep.subr.bf16.mxu0 0
  %173 = vmatpush2.bf16.msra.mxu0 0
  %174 = vmatprep.mubr.bf16.mxu0 0
  %175 = vmatmul.mubr.bf16.gmra.mxu0 %v140
  %v176 = vpop.f32.mrf.mxu0
  %v177 = vadd.f32 %v112, %v176
  %v178 = vpop.f32.mrf.mxu0
  %v179 = vpop.f32.mrf.mxu0
  %v180 = vadd.f32 %v112, %v179
  %v181 = vpop.f32.mrf.mxu0
  %182 = vdwg.mxu0
  %vm183 = vcmask 56320
  %184 = vst.msk [vmem:[%s5] sm:$0xff] %vm183, %v177
  %185 = vst.msk [vmem:[%s5 + $0x8] sm:$0xff] %vm183, %v180
  // Predicated region
  $region22: #{actor_critic_forward.1} parent=0 // pred_check
    _
  $region23: #{actor_critic_forward.1} parent=0 // pred_check_branch
    %187 = sbr.rel (0) target = $region25
  $region24: #{actor_critic_forward.1} parent=0 // pred_region
    _
  $region25: #{actor_critic_forward.1} parent=0 // pred_fallthru
    _
  // Predicated region
  $region26: #{actor_critic_forward.1} parent=0 // pred_check
    _
  $region27: #{actor_critic_forward.1} parent=0 // pred_check_branch
    %189 = sbr.rel (0) target = $region29
  $region28: #{actor_critic_forward.1} parent=0 // pred_region
    _
  $region29: #{actor_critic_forward.1} parent=0 // pred_fallthru
    _

</llo_original>
